<compile_context>
chip_gen: v6e
topology: v6e:2x2x1
jax: 0.10.0
libtpu: 0.0.40
codegen_flags: <defaults>
</compile_context>

<pallas_src>
import functools

import jax
import jax.numpy as jnp
from jax.experimental import pallas as pl
from jax.experimental.pallas import tpu as pltpu


def _round_up(x, m):
    return ((x + m - 1) // m) * m


def _patch_proj_kernel(x_ref, w_ref, b_ref, o_ref):
    # x_ref: (TILE_M, K) bf16 patch rows   (streamed, double-buffered)
    # w_ref: (K, E)      bf16 weight       (constant index_map -> resident)
    # b_ref: (1, E)      f32 bias          (resident)
    # o_ref: (TILE_M, E) f32 output tile
    acc = jnp.dot(x_ref[...], w_ref[...], preferred_element_type=jnp.float32)
    o_ref[...] = (acc + b_ref[...].astype(jnp.float32)).astype(o_ref.dtype)


def patch_embed_forward(x, weight, bias, patch_size, *,
                        compute_dtype=jnp.bfloat16,
                        tile_m=512,
                        flatten_to_tokens=False):
    """PatchEmbed.forward.

    Args:
      x:      (B, C, H, W)  float32  (NCHW, PyTorch convention)
      weight: (E, C, P, P)  float32  (Conv2d weight)
      bias:   (E,)          float32  (Conv2d bias)
      patch_size: int P (kernel_size == stride == P)
      compute_dtype: dtype used for the streamed GEMM operands (accumulation
        is always f32 on the MXU).
      tile_m: rows of patches per grid step (512-1024 recommended; sized to
        fit v7x's 64 MiB VMEM with double-buffering).
      flatten_to_tokens: if True, return (B, Hp*Wp, E) and skip the NCHW
        transpose (saves one full read+write of the output in HBM).

    Returns:
      (B, E, H//P, W//P) in x.dtype — same as the PyTorch module — or
      (B, Hp*Wp, E) if flatten_to_tokens.
    """
    B, C, H, W = x.shape
    E = weight.shape[0]
    P = patch_size
    Hp, Wp = H // P, W // P
    M = B * Hp * Wp
    K = C * P * P

    # --- layout glue: extract non-overlapping patches, flatten in (c, p, q)
    # order so it matches weight.reshape(E, C*P*P).  allow_input_fusion below
    # lets XLA fuse this transpose into the kernel's input DMA when possible.
    # TODO(synk): fold the patch gather into the kernel's index_map (grid over
    # (b, hp, c, p)) to guarantee zero standalone im2col traffic.
    patches = x.reshape(B, C, Hp, P, Wp, P)
    patches = jnp.transpose(patches, (0, 2, 4, 1, 3, 5)).reshape(M, K)

    w_mat = weight.reshape(E, K).T                       # (K, E)
    b_mat = bias.reshape(1, E).astype(jnp.float32)       # (1, E), stays f32

    # Stream the big operands in bf16; K/E block dims are kept full-width so
    # the (8,128) divisibility rule is satisfied for any K/E.
    patches = patches.astype(compute_dtype)
    w_mat = w_mat.astype(compute_dtype)

    # --- M tiling: biggest lever.  tile_m is a multiple of the sublane pack
    # (16 for bf16) and VMEM use is bounded and generation-portable
    # (fits v7x's 64 MiB as well as v5e/v6e's 128 MiB).
    bytes_in = jnp.dtype(compute_dtype).itemsize
    sub = 16 if bytes_in == 2 else 8
    tm = min(tile_m, _round_up(M, sub))
    m_pad = _round_up(M, tm)
    if m_pad != M:
        patches = jnp.pad(patches, ((0, m_pad - M), (0, 0)))
    grid_m = m_pad // tm

    # Explicit VMEM budget: 2x streamed input tile + 2x output tile + resident
    # weight/bias, with headroom.  Clamped to [32 MiB, 64 MiB] so it is valid
    # on v7x (64 MiB physical per TC) and raises v5e's 16 MiB default.
    vmem_bytes = (2 * tm * K * bytes_in + 2 * tm * E * 4
                  + K * E * bytes_in + E * 4)
    vmem_limit = min(max(int(vmem_bytes * 2), 32 * 1024 * 1024),
                     64 * 1024 * 1024)

    out = pl.pallas_call(
        _patch_proj_kernel,
        out_shape=jax.ShapeDtypeStruct((m_pad, E), x.dtype),
        grid_spec=pltpu.PrefetchScalarGridSpec(
            num_scalar_prefetch=0,
            grid=(grid_m,),
            in_specs=[
                pl.BlockSpec((tm, K), lambda i: (i, 0)),   # streamed patches
                pl.BlockSpec((K, E), lambda i: (0, 0)),    # resident weight
                pl.BlockSpec((1, E), lambda i: (0, 0)),    # resident bias
            ],
            out_specs=pl.BlockSpec((tm, E), lambda i: (i, 0)),
        ),
        compiler_params=pltpu.CompilerParams(
            # M tiles are independent -> shard across v7x's 2 TensorCores
            # (no-op on v5e/v6e).
            dimension_semantics=("parallel",),
            vmem_limit_bytes=vmem_limit,
            # Let XLA fuse the im2col transpose/cast into the input DMA of the
            # patches operand (avoids a standalone HBM round-trip).
            allow_input_fusion=[True, False, False],
        ),
    )(patches, w_mat, b_mat)

    if m_pad != M:
        out = out[:M]
    out = out.reshape(B, Hp, Wp, E)
    if flatten_to_tokens:
        return out.reshape(B, Hp * Wp, E)        # (B, N, E) token layout
    # Module semantics: nn.Conv2d output layout (B, E, Hp, Wp).
    return jnp.transpose(out, (0, 3, 1, 2))


if __name__ == "__main__":
    # Small shapes consistent with the module: img_size=16, patch_size=4,
    # in_chans=4, embed_dim=32, batch=2.
    B, C, H, W = 2, 4, 16, 16
    P = 4
    E = 32

    key = jax.random.PRNGKey(0)
    kx, kw, kb = jax.random.split(key, 3)
    x = jax.random.normal(kx, (B, C, H, W), dtype=jnp.float32)
    # Deterministic synthetic Conv2d parameters (shapes match nn.Conv2d(C, E, P, stride=P)).
    weight = jax.random.normal(kw, (E, C, P, P), dtype=jnp.float32) * 0.02
    bias = jax.random.normal(kb, (E,), dtype=jnp.float32) * 0.02

    fwd = jax.jit(functools.partial(patch_embed_forward, patch_size=P))
    out = jax.block_until_ready(fwd(x, weight, bias))
    assert out.shape == (B, E, H // P, W // P)

    Hp, Wp = H // P, W // P
    K = C * P * P

    # Strict check: same bf16-rounded operands, f32 accumulation (matches the
    # kernel's numerics up to accumulation order).
    patches_ref = jnp.transpose(x.reshape(B, C, Hp, P, Wp, P),
                                (0, 2, 4, 1, 3, 5)).reshape(B * Hp * Wp, K)
    patches_ref = patches_ref.astype(jnp.bfloat16).astype(jnp.float32)
    w_ref = weight.reshape(E, K).T.astype(jnp.bfloat16).astype(jnp.float32)
    ref_mm = (patches_ref @ w_ref + bias.reshape(1, E)).reshape(B, Hp, Wp, E)
    ref_mm = jnp.transpose(ref_mm, (0, 3, 1, 2))
    assert jnp.allclose(out, ref_mm, atol=1e-4, rtol=1e-4)

    # Semantic check vs the full-f32 conv (tolerance accounts for bf16
    # streaming of patches/weights).
    ref_conv = jax.lax.conv_general_dilated(
        x, weight, window_strides=(P, P), padding="VALID",
        dimension_numbers=("NCHW", "OIHW", "NCHW")) + bias.reshape(1, E, 1, 1)
    assert jnp.allclose(out, ref_conv, atol=2e-2, rtol=2e-2)

    print("KERNEL_OK")
</pallas_src>

<mosaic_0001>
module attributes {stable_mosaic.version = 11 : i64} {
  func.func @_patch_proj_kernel(%arg0: i32, %arg1: memref<32x64xbf16, #tpu.memory_space<vmem>>, %arg2: memref<64x32xbf16, #tpu.memory_space<vmem>>, %arg3: memref<1x32xf32, #tpu.memory_space<vmem>>, %arg4: memref<32x32xf32, #tpu.memory_space<vmem>>) attributes {dimension_semantics = [#tpu.dimension_semantics<parallel>], iteration_bounds = array<i64: 1>, scalar_prefetch = 0 : i64, scratch_operands = 0 : i64, tpu.core_type = #tpu.core_type<tc>, window_params = [{transform_indices = @transform_0, window_bounds = array<i64: 32, 64>}, {pipeline_mode = #tpu.pipeline_mode<synchronous>, transform_indices = @transform_1, window_bounds = array<i64: 64, 32>}, {pipeline_mode = #tpu.pipeline_mode<synchronous>, transform_indices = @transform_2, window_bounds = array<i64: 1, 32>}, {transform_indices = @transform_3, window_bounds = array<i64: 32, 32>}]} {
    %c0 = arith.constant 0 : index
    %c0_0 = arith.constant 0 : index
    %0 = vector.load %arg1[%c0, %c0_0] : memref<32x64xbf16, #tpu.memory_space<vmem>>, vector<32x64xbf16>
    %c0_1 = arith.constant 0 : index
    %c0_2 = arith.constant 0 : index
    %1 = vector.load %arg2[%c0_1, %c0_2] : memref<64x32xbf16, #tpu.memory_space<vmem>>, vector<64x32xbf16>
    %cst = arith.constant dense<0.000000e+00> : vector<32x32xf32>
    %2 = tpu.matmul %0, %1, %cst {dimension_numbers = #tpu.dot_dimension_numbers<[1], [0], [0], [1], [0, 0, 1, 1], [], []>} : vector<32x64xbf16>, vector<64x32xbf16>, vector<32x32xf32> -> vector<32x32xf32>
    %c0_3 = arith.constant 0 : index
    %c0_4 = arith.constant 0 : index
    %3 = vector.load %arg3[%c0_3, %c0_4] : memref<1x32xf32, #tpu.memory_space<vmem>>, vector<1x32xf32>
    %4 = vector.broadcast %3 : vector<1x32xf32> to vector<32x32xf32>
    %5 = arith.addf %2, %4 : vector<32x32xf32>
    %c0_5 = arith.constant 0 : index
    %c0_6 = arith.constant 0 : index
    %6 = vector.load %arg4[%c0_5, %c0_6] : memref<32x32xf32, #tpu.memory_space<vmem>>, vector<32x32xf32>
    tpu.vector_store %arg4[%c0_5, %c0_6], %5 {strides = array<i32>} : memref<32x32xf32, #tpu.memory_space<vmem>>, vector<32x32xf32>,
    return
  }
  func.func @transform_0(%arg0: i32) -> (i32, i32) {
    %c0_i32 = arith.constant 0 : i32
    %c0_i32_0 = arith.constant 0 : i32
    return %arg0, %c0_i32 : i32, i32
  }
  func.func @transform_1(%arg0: i32) -> (i32, i32) {
    %c0_i32 = arith.constant 0 : i32
    %c0_i32_0 = arith.constant 0 : i32
    %c0_i32_1 = arith.constant 0 : i32
    return %c0_i32, %c0_i32_0 : i32, i32
  }
  func.func @transform_2(%arg0: i32) -> (i32, i32) {
    %c0_i32 = arith.constant 0 : i32
    %c0_i32_0 = arith.constant 0 : i32
    %c0_i32_1 = arith.constant 0 : i32
    return %c0_i32, %c0_i32_0 : i32, i32
  }
  func.func @transform_3(%arg0: i32) -> (i32, i32) {
    %c0_i32 = arith.constant 0 : i32
    %c0_i32_0 = arith.constant 0 : i32
    return %arg0, %c0_i32 : i32, i32
  }
}

</mosaic_0001>

<llo_original>
// kernel: patch_embed_forward.1
$region0: #{patch_embed_forward.1}
  #allocation0 [shape = 'u32[]', space=smem, size = 0x4, offset = 0x4, fixed_abs, tag = 'smem constant byte address 0x4 - core index']
  #allocation1 [shape = 'u32[144,128]{1,0:T(1,128)}', space=vmem, size = 0x12000, scoped, tag = 'internal scratch']
  %s0 = inlined_call_operand.vmem [shape: bf16[32,64], index: 0, kind: input, shape index: {}]
  %s1 = inlined_call_operand.vmem [shape: bf16[64,32], index: 1, kind: input, shape index: {}]
  %s2 = inlined_call_operand.vmem [shape: f32[1,32], index: 2, kind: input, shape index: {}]
  %s3 = inlined_call_operand.hbm [shape: f32[32,32], index: 3, kind: output, shape index: {}]
  %s4 = sld [smem:[#allocation0]]
  $region22: #{patch_embed_forward.1} parent=0
    _
  %s6 = ssub.s32 1, %s4
  %s7 = scalar_select 0, %s6, %s4
  $region1: #{patch_embed_forward.1} parent=0
    #allocation2 [shape = 'u8[16384]{0}', space=vmem, size = 0x4000, scoped, tag = 'output window, operand 0, single buffered']
    #allocation3 [shape = 's32[1]{0}', space=sflag, size = 0x4, scoped, tag = 'scoped memory for patch_embed_forward.1']
    %8 = vsyncpa [#allocation3], 0
    // Predicated region
    $region2: #{patch_embed_forward.1} parent=1 // pred_check
      _
    $region3: #{patch_embed_forward.1} parent=1 // pred_check_branch
      %10 = sbr.rel (0) target = $region5
    $region4: #{patch_embed_forward.1} parent=1 // pred_region
      _
    $region5: #{patch_embed_forward.1} parent=1 // pred_fallthru
      _
    // Predicated region
    $region6: #{patch_embed_forward.1} parent=1 // pred_check
      _
    $region7: #{patch_embed_forward.1} parent=1 // pred_check_branch
      %12 = sbr.rel (0) target = $region9
    $region8: #{patch_embed_forward.1} parent=1 // pred_region
      _
    $region9: #{patch_embed_forward.1} parent=1 // pred_fallthru
      _
    // Predicated region
    $region10: #{patch_embed_forward.1} parent=1 // pred_check
      _
    $region11: #{patch_embed_forward.1} parent=1 // pred_check_branch
      %14 = sbr.rel (0) target = $region13
    $region12: #{patch_embed_forward.1} parent=1 // pred_region
      _
    $region13: #{patch_embed_forward.1} parent=1 // pred_fallthru
      _
    %v16 = vld [vmem:[%s0] sm:$0xf]
    %v17 = vld [vmem:[%s0 + $0x4] sm:$0xf]
    %v18 = vld [vmem:[%s0 + $0x8] sm:$0xf]
    %v19 = vld [vmem:[%s0 + $0xc] sm:$0xf]
    %v20 = vld [vmem:[%s1] sm:$0xf]
    %v21 = vld [vmem:[%s1 + $0x4] sm:$0xf]
    %v22 = vld [vmem:[%s1 + $0x8] sm:$0xf]
    %v23 = vld [vmem:[%s1 + $0xc] sm:$0xf]
    %v24 = vld [vmem:[%s1 + $0x10] sm:$0xf]
    %v25 = vld [vmem:[%s1 + $0x14] sm:$0xf]
    %v26 = vld [vmem:[%s1 + $0x18] sm:$0xf]
    %v27 = vld [vmem:[%s1 + $0x1c] sm:$0xf]
    %v28 = vld [vmem:[%s2] sm:$0x1]
    %v30 = vlaneseq
    %v31 = vshrl.u32 %v30, 7
    %v32 = vsub.s32 0, %v31
    %v33 = vrot.slane %v28, %v32
    %v39 = vunpack.c.l.b16 %v16
    %v40 = vunpack.c.l.b16 %v17
    %v41 = vunpack.c.l.b16 %v18
    %v42 = vunpack.c.l.b16 %v19
    %v43 = vpack.c.b16 %v40, %v39
    %v44 = vpack.c.b16 %v42, %v41
    %v53 = vunpack.c.l.b16 %v20
    %v54 = vunpack.c.l.b16 %v21
    %v55 = vunpack.c.l.b16 %v22
    %v56 = vunpack.c.l.b16 %v23
    %v57 = vunpack.c.l.b16 %v24
    %v58 = vunpack.c.l.b16 %v25
    %v59 = vunpack.c.l.b16 %v26
    %v60 = vunpack.c.l.b16 %v27
    %v61 = vpack.c.b16 %v54, %v53
    %v62 = vpack.c.b16 %v56, %v55
    %v63 = vpack.c.b16 %v58, %v57
    %v64 = vpack.c.b16 %v60, %v59
    %vm69 = vcmask 523264
    %v71 = vsel %vm69, %v43, 0
    %v74 = vsel %vm69, %v44, 0
    %76 = vmatprep.subr.bf16.mxu0 0
    %77 = vmatpush1.bf16.msra.mxu0 0
    %78 = vmatprep.subr.bf16.mxu0 0
    %79 = vmatpush1.bf16.msra.mxu0 0
    %80 = vmatprep.subr.bf16.mxu0 0
    %81 = vmatpush1.bf16.msra.mxu0 0
    %82 = vmatprep.subr.bf16.mxu0 0
    %83 = vmatpush1.bf16.msra.mxu0 0
    %84 = vmatprep.subr.bf16.mxu0 0
    %85 = vmatpush1.bf16.msra.mxu0 %v64
    %86 = vmatprep.subr.bf16.mxu0 0
    %87 = vmatpush1.bf16.msra.mxu0 %v63
    %88 = vmatprep.subr.bf16.mxu0 0
    %89 = vmatpush1.bf16.msra.mxu0 %v62
    %90 = vmatprep.subr.bf16.mxu0 0
    %91 = vmatpush1.bf16.msra.mxu0 %v61
    %92 = vmatprep.subr.bf16.mxu0 0
    %93 = vmatpush2.bf16.msra.mxu0 0
    %94 = vmatprep.subr.bf16.mxu0 0
    %95 = vmatpush2.bf16.msra.mxu0 0
    %96 = vmatprep.subr.bf16.mxu0 0
    %97 = vmatpush2.bf16.msra.mxu0 0
    %98 = vmatprep.subr.bf16.mxu0 0
    %99 = vmatpush2.bf16.msra.mxu0 0
    %100 = vmatprep.subr.bf16.mxu0 0
    %101 = vmatpush2.bf16.msra.mxu0 0
    %102 = vmatprep.subr.bf16.mxu0 0
    %103 = vmatpush2.bf16.msra.mxu0 0
    %104 = vmatprep.subr.bf16.mxu0 0
    %105 = vmatpush2.bf16.msra.mxu0 0
    %106 = vmatprep.subr.bf16.mxu0 0
    %107 = vmatpush2.bf16.msra.mxu0 0
    %108 = vmatprep.mubr.bf16.mxu0 0
    %109 = vmatmul.mubr.bf16.gmra.mxu0 %v71
    %v110 = vpop.f32.mrf.mxu0
    %v111 = vadd.f32 %v33, %v110
    %v112 = vpop.f32.mrf.mxu0
    %v113 = vpop.f32.mrf.mxu0
    %v114 = vadd.f32 %v33, %v113
    %v115 = vpop.f32.mrf.mxu0
    %116 = vmatprep.mubr.bf16.mxu0 0
    %117 = vmatmul.mubr.bf16.gmra.mxu0 %v74
    %v118 = vpop.f32.mrf.mxu0
    %v119 = vadd.f32 %v33, %v118
    %v120 = vpop.f32.mrf.mxu0
    %v121 = vpop.f32.mrf.mxu0
    %v122 = vadd.f32 %v33, %v121
    %v123 = vpop.f32.mrf.mxu0
    %124 = vdwg.mxu0
    %vm125 = vcmask 261120
    %126 = vst.msk [vmem:[#allocation2] sm:$0xff] %vm125, %v111
    %127 = vst.msk [vmem:[#allocation2 + $0x8] sm:$0xff] %vm125, %v114
    %128 = vst.msk [vmem:[#allocation2 + $0x10] sm:$0xff] %vm125, %v119
    %129 = vst.msk [vmem:[#allocation2 + $0x18] sm:$0xff] %vm125, %v122
    // Predicated region
    $region14: #{patch_embed_forward.1} parent=1 // pred_check
      _
    $region15: #{patch_embed_forward.1} parent=1 // pred_check_branch
      %131 = sbr.rel (0) target = $region17
    $region16: #{patch_embed_forward.1} parent=1 // pred_region
      %s133 = ssub.s32 512, 512
      %134 = vsyncadd [#allocation3], %s133
      %s135 = sshll.u32 [#allocation2], 4
      %s136 = int_to_ptr.vmem [resolvable:$true] %s135
      %141 = dma.vmem_to_hbm [thread:$0]  %s136, 512, %s3, [#allocation3], 128, 128, 8
    $region17: #{patch_embed_forward.1} parent=1 // pred_fallthru
      _
    // Predicated region
    $region18: #{patch_embed_forward.1} parent=1 // pred_check
      _
    $region19: #{patch_embed_forward.1} parent=1 // pred_check_branch
      %143 = sbr.rel (0) target = $region21
    $region20: #{patch_embed_forward.1} parent=1 // pred_region
      %144 = dma.done [#allocation3], 512
    $region21: #{patch_embed_forward.1} parent=1 // pred_fallthru
      _
    %145 = vsyncpa [#allocation3], 1

</llo_original>
